<compile_context>
chip_gen: v7x
topology: tpu7x:2x2x1
jax: 0.10.0
libtpu: 0.0.40
codegen_flags: <defaults>
</compile_context>

<pallas_src>
import functools

import jax
import jax.numpy as jnp
from jax.experimental import pallas as pl
from jax.experimental.pallas import tpu as pltpu


def _inv_or_nan(count):
    # Empty difference set (some spatial dim == 1) -> mean of empty slice is
    # NaN in the PyTorch reference; reproduce that instead of raising.
    return (1.0 / float(count)) if count > 0 else float("nan")


def _joint_loss_kernel(out_ref, tgt_ref, partial_ref, *, H, W, n_total, w_ce, w_var):
    # out_ref: (C, D, H*W) logits of one batch sample (leading N dim squeezed).
    # tgt_ref: (D, H*W) int32 class ids of the same sample.
    x = out_ref[...].astype(jnp.float32)          # bf16 inputs upcast here
    t = tgt_ref[...]
    C, D, HW = x.shape

    # ------------- Cross-entropy partial: sum(lse - logit_at_target) ---------
    m = jnp.max(x, axis=0)                                          # (D, HW)
    lse = jnp.log(jnp.sum(jnp.exp(x - m[None]), axis=0)) + m        # (D, HW)
    picked = jnp.zeros((D, HW), jnp.float32)
    for c in range(C):            # small static loop; no class iota / one-hot
        picked = picked + jnp.where(t == c, x[c], 0.0)
    ce_partial = jnp.sum(lse - picked)            # divide by N*D*H*W below

    # ------------- 3D total variation (forward differences) ------------------
    # Forward neighbours via XLU rolls on the whole (C, D, HW) block:
    #   xd[:, d, i]  = x[:, (d+1) % D, i]
    #   xh[:, d, i]  = x[:, d, (i+W) % HW]
    #   xw[:, d, i]  = x[:, d, (i+1) % HW]
    xd = pltpu.roll(x, D - 1, axis=1)
    xh = pltpu.roll(x, HW - W, axis=2)
    xw = pltpu.roll(x, HW - 1, axis=2)

    # Validity masks from plain iota arithmetic, with the static global pair
    # counts (N*C*(D-1)*H*W, N*C*D*(H-1)*W, N*C*D*H*(W-1)) folded in so the
    # masked |diff| only costs one multiply per element.
    row = jax.lax.broadcasted_iota(jnp.int32, (D, HW), 0)
    lane = jax.lax.broadcasted_iota(jnp.int32, (D, HW), 1)
    msk_d = (row < (D - 1)).astype(jnp.float32) * _inv_or_nan(n_total * C * (D - 1) * H * W)
    msk_h = (lane < (H - 1) * W).astype(jnp.float32) * _inv_or_nan(n_total * C * D * (H - 1) * W)
    msk_w = ((lane % W) != (W - 1)).astype(jnp.float32) * _inv_or_nan(n_total * C * D * H * (W - 1))

    tv_partial = jnp.sum(jnp.abs(xd - x) * msk_d[None]
                         + jnp.abs(xh - x) * msk_h[None]
                         + jnp.abs(xw - x) * msk_w[None])

    loss_partial = (float(w_ce) / float(n_total * D * HW)) * ce_partial \
        + float(w_var) * tv_partial
    partial_ref[...] = jnp.full((1, 1, 1), loss_partial, jnp.float32)


def joint_loss(output, target, *, w_ce, w_var):
    """output: (N, C, D, H, W) float logits; target: (N, D, H, W) int class ids."""
    N, C, D, H, W = output.shape
    HW = H * W
    # Lane-dense views: fuse H and W into the minor axis (a contiguous-array
    # reshape in HBM is free).  Targets go in as int32.
    out2 = output.reshape(N, C, D, HW)
    tgt2 = target.astype(jnp.int32).reshape(N, D, HW)

    kernel = functools.partial(_joint_loss_kernel, H=H, W=W, n_total=N,
                               w_ce=float(w_ce), w_var=float(w_var))
    partials = pl.pallas_call(
        kernel,
        grid=(N,),
        out_shape=jax.ShapeDtypeStruct((N, 1, 1), jnp.float32),
        in_specs=[
            pl.BlockSpec((None, C, D, HW), lambda n: (n, 0, 0, 0)),
            pl.BlockSpec((None, D, HW), lambda n: (n, 0, 0)),
        ],
        out_specs=pl.BlockSpec((1, 1, 1), lambda n: (n, 0, 0)),
        compiler_params=pltpu.CompilerParams(
            dimension_semantics=("parallel",)),
    )(out2, tgt2)
    return jnp.sum(partials)


def _joint_loss_ref(output, target, *, w_ce, w_var):
    """Pure-JAX reference mirroring the PyTorch module."""
    x = output.astype(jnp.float32)
    logp = jax.nn.log_softmax(x, axis=1)
    onehot = jax.nn.one_hot(target, x.shape[1], axis=1, dtype=jnp.float32)
    ce = -jnp.mean(jnp.sum(onehot * logp, axis=1))
    tv = (jnp.mean(jnp.abs(x[:, :, 1:] - x[:, :, :-1]))
          + jnp.mean(jnp.abs(x[:, :, :, 1:] - x[:, :, :, :-1]))
          + jnp.mean(jnp.abs(x[:, :, :, :, 1:] - x[:, :, :, :, :-1])))
    return w_ce * ce + w_var * tv


if __name__ == "__main__":
    # JointLoss has no learnable parameters; its "init" is the two scalar weights.
    w_ce, w_var = 1.0, 0.1

    N, C, D, H, W = 2, 4, 8, 8, 16   # H*W = 128 -> lane-dense fused minor axis
    key = jax.random.PRNGKey(0)
    k_out, k_tgt = jax.random.split(key)
    output = jax.random.normal(k_out, (N, C, D, H, W), dtype=jnp.float32)
    target = jax.random.randint(k_tgt, (N, D, H, W), 0, C, dtype=jnp.int32)

    loss = joint_loss(output, target, w_ce=w_ce, w_var=w_var)
    loss = jax.block_until_ready(loss)

    ref = _joint_loss_ref(output, target, w_ce=w_ce, w_var=w_var)
    assert jnp.allclose(loss, ref, rtol=1e-3, atol=1e-4), (loss, ref)

    print("KERNEL_OK")
</pallas_src>

<mosaic_0001>
module attributes {stable_mosaic.version = 11 : i64} {
  func.func @_joint_loss_kernel(%arg0: i32, %arg1: memref<1x4x8x128xf32, #tpu.memory_space<vmem>>, %arg2: memref<1x8x128xi32, #tpu.memory_space<vmem>>, %arg3: memref<1x1x1xf32, #tpu.memory_space<vmem>>) attributes {dimension_semantics = [#tpu.dimension_semantics<parallel>], iteration_bounds = array<i64: 2>, scalar_prefetch = 0 : i64, scratch_operands = 0 : i64, tpu.core_type = #tpu.core_type<tc>, window_params = [{transform_indices = @transform_0, window_bounds = array<i64: 1, 4, 8, 128>}, {transform_indices = @transform_1, window_bounds = array<i64: 1, 8, 128>}, {transform_indices = @transform_2, window_bounds = array<i64: 1, 1, 1>}]} {
    %c0 = arith.constant 0 : index
    %c0_0 = arith.constant 0 : index
    %c0_1 = arith.constant 0 : index
    %c0_2 = arith.constant 0 : index
    %0 = vector.load %arg1[%c0, %c0_0, %c0_1, %c0_2] : memref<1x4x8x128xf32, #tpu.memory_space<vmem>>, vector<1x4x8x128xf32>
    %1 = vector.shape_cast %0 : vector<1x4x8x128xf32> to vector<4x8x128xf32>
    %c0_3 = arith.constant 0 : index
    %c0_4 = arith.constant 0 : index
    %c0_5 = arith.constant 0 : index
    %2 = vector.load %arg2[%c0_3, %c0_4, %c0_5] : memref<1x8x128xi32, #tpu.memory_space<vmem>>, vector<1x8x128xi32>
    %3 = vector.shape_cast %2 : vector<1x8x128xi32> to vector<8x128xi32>
    %cst = arith.constant dense<0xFF800000> : vector<8x128xf32>
    %4 = vector.multi_reduction <maximumf>, %1, %cst [0] : vector<4x8x128xf32> to vector<8x128xf32>
    %5 = vector.shape_cast %4 : vector<8x128xf32> to vector<1x8x128xf32>
    %6 = vector.broadcast %5 : vector<1x8x128xf32> to vector<4x8x128xf32>
    %7 = arith.subf %1, %6 : vector<4x8x128xf32>
    %8 = math.exp %7 : vector<4x8x128xf32>
    %cst_6 = arith.constant dense<0.000000e+00> : vector<8x128xf32>
    %9 = vector.multi_reduction <add>, %8, %cst_6 [0] : vector<4x8x128xf32> to vector<8x128xf32>
    %10 = math.log %9 : vector<8x128xf32>
    %11 = arith.addf %10, %4 : vector<8x128xf32>
    %cst_7 = arith.constant 0.000000e+00 : f32
    %12 = vector.broadcast %cst_7 : f32 to vector<8x128xf32>
    %c0_i32 = arith.constant 0 : i32
    %13 = vector.broadcast %c0_i32 : i32 to vector<8x128xi32>
    %14 = arith.cmpi eq, %3, %13 : vector<8x128xi32>
    %15 = vector.extract_strided_slice %1 {offsets = [0, 0, 0], sizes = [1, 8, 128], strides = [1, 1, 1]} : vector<4x8x128xf32> to vector<1x8x128xf32>
    %16 = vector.shape_cast %15 : vector<1x8x128xf32> to vector<8x128xf32>
    %cst_8 = arith.constant 0.000000e+00 : f32
    %17 = vector.broadcast %cst_8 : f32 to vector<8x128xf32>
    %18 = arith.select %14, %16, %17 : vector<8x128xi1>, vector<8x128xf32>
    %19 = arith.addf %12, %18 : vector<8x128xf32>
    %c1_i32 = arith.constant 1 : i32
    %20 = vector.broadcast %c1_i32 : i32 to vector<8x128xi32>
    %21 = arith.cmpi eq, %3, %20 : vector<8x128xi32>
    %22 = vector.extract_strided_slice %1 {offsets = [1, 0, 0], sizes = [1, 8, 128], strides = [1, 1, 1]} : vector<4x8x128xf32> to vector<1x8x128xf32>
    %23 = vector.shape_cast %22 : vector<1x8x128xf32> to vector<8x128xf32>
    %cst_9 = arith.constant 0.000000e+00 : f32
    %24 = vector.broadcast %cst_9 : f32 to vector<8x128xf32>
    %25 = arith.select %21, %23, %24 : vector<8x128xi1>, vector<8x128xf32>
    %26 = arith.addf %19, %25 : vector<8x128xf32>
    %c2_i32 = arith.constant 2 : i32
    %27 = vector.broadcast %c2_i32 : i32 to vector<8x128xi32>
    %28 = arith.cmpi eq, %3, %27 : vector<8x128xi32>
    %29 = vector.extract_strided_slice %1 {offsets = [2, 0, 0], sizes = [1, 8, 128], strides = [1, 1, 1]} : vector<4x8x128xf32> to vector<1x8x128xf32>
    %30 = vector.shape_cast %29 : vector<1x8x128xf32> to vector<8x128xf32>
    %cst_10 = arith.constant 0.000000e+00 : f32
    %31 = vector.broadcast %cst_10 : f32 to vector<8x128xf32>
    %32 = arith.select %28, %30, %31 : vector<8x128xi1>, vector<8x128xf32>
    %33 = arith.addf %26, %32 : vector<8x128xf32>
    %c3_i32 = arith.constant 3 : i32
    %34 = vector.broadcast %c3_i32 : i32 to vector<8x128xi32>
    %35 = arith.cmpi eq, %3, %34 : vector<8x128xi32>
    %36 = vector.extract_strided_slice %1 {offsets = [3, 0, 0], sizes = [1, 8, 128], strides = [1, 1, 1]} : vector<4x8x128xf32> to vector<1x8x128xf32>
    %37 = vector.shape_cast %36 : vector<1x8x128xf32> to vector<8x128xf32>
    %cst_11 = arith.constant 0.000000e+00 : f32
    %38 = vector.broadcast %cst_11 : f32 to vector<8x128xf32>
    %39 = arith.select %35, %37, %38 : vector<8x128xi1>, vector<8x128xf32>
    %40 = arith.addf %33, %39 : vector<8x128xf32>
    %41 = arith.subf %11, %40 : vector<8x128xf32>
    %42 = vector.shape_cast %41 : vector<8x128xf32> to vector<1x8x128xf32>
    %cst_12 = arith.constant dense<0.000000e+00> : vector<1xf32>
    %43 = vector.multi_reduction <add>, %42, %cst_12 [1, 2] : vector<1x8x128xf32> to vector<1xf32>
    %44 = vector.shape_cast %43 : vector<1xf32> to vector<1x1x1xf32>
    %45 = vector.extract %44[0, 0, 0] : f32 from vector<1x1x1xf32>
    %c7_i32 = arith.constant 7 : i32
    %46 = tpu.dynamic_rotate %1 by %c7_i32 dim 1 : vector<4x8x128xf32>, i32 -> vector<4x8x128xf32>
    %c112_i32 = arith.constant 112 : i32
    %47 = tpu.dynamic_rotate %1 by %c112_i32 dim 2 : vector<4x8x128xf32>, i32 -> vector<4x8x128xf32>
    %c127_i32 = arith.constant 127 : i32
    %48 = tpu.dynamic_rotate %1 by %c127_i32 dim 2 : vector<4x8x128xf32>, i32 -> vector<4x8x128xf32>
    %49 = tpu.iota {dimensions = array<i32: 0>} : vector<8x128xi32>
    %50 = tpu.iota {dimensions = array<i32: 1>} : vector<8x128xi32>
    %c7_i32_13 = arith.constant 7 : i32
    %51 = vector.broadcast %c7_i32_13 : i32 to vector<8x128xi32>
    %52 = arith.cmpi slt, %49, %51 : vector<8x128xi32>
    %53 = arith.extui %52 : vector<8x128xi1> to vector<8x128xi32>
    %54 = arith.sitofp %53 : vector<8x128xi32> to vector<8x128xf32>
    %cst_14 = arith.constant 1.39508935E-4 : f32
    %55 = vector.broadcast %cst_14 : f32 to vector<8x128xf32>
    %56 = arith.mulf %54, %55 : vector<8x128xf32>
    %c112_i32_15 = arith.constant 112 : i32
    %57 = vector.broadcast %c112_i32_15 : i32 to vector<8x128xi32>
    %58 = arith.cmpi slt, %50, %57 : vector<8x128xi32>
    %59 = arith.extui %58 : vector<8x128xi1> to vector<8x128xi32>
    %60 = arith.sitofp %59 : vector<8x128xi32> to vector<8x128xf32>
    %cst_16 = arith.constant 1.39508935E-4 : f32
    %61 = vector.broadcast %cst_16 : f32 to vector<8x128xf32>
    %62 = arith.mulf %60, %61 : vector<8x128xf32>
    %c16_i32 = arith.constant 16 : i32
    %c0_i32_17 = arith.constant 0 : i32
    %63 = arith.cmpi eq, %c16_i32, %c0_i32_17 : i32
    %c1_i32_18 = arith.constant 1 : i32
    %64 = arith.select %63, %c1_i32_18, %c16_i32 : i32
    %65 = vector.broadcast %64 : i32 to vector<8x128xi32>
    %66 = arith.remsi %50, %65 : vector<8x128xi32>
    %c0_i32_19 = arith.constant 0 : i32
    %67 = vector.broadcast %c0_i32_19 : i32 to vector<8x128xi32>
    %68 = arith.cmpi ne, %66, %67 : vector<8x128xi32>
    %c0_i32_20 = arith.constant 0 : i32
    %69 = vector.broadcast %c0_i32_20 : i32 to vector<8x128xi32>
    %70 = arith.cmpi slt, %66, %69 : vector<8x128xi32>
    %c0_i32_21 = arith.constant 0 : i32
    %71 = arith.cmpi slt, %64, %c0_i32_21 : i32
    %72 = vector.broadcast %71 : i1 to vector<8x128xi1>
    %73 = vector.broadcast %72 : vector<8x128xi1> to vector<8x128xi1>
    %74 = arith.xori %70, %73 : vector<8x128xi1>
    %75 = arith.andi %74, %68 : vector<8x128xi1>
    %76 = vector.broadcast %64 : i32 to vector<8x128xi32>
    %77 = arith.addi %66, %76 : vector<8x128xi32>
    %78 = arith.select %75, %77, %66 : vector<8x128xi1>, vector<8x128xi32>
    %c15_i32 = arith.constant 15 : i32
    %79 = vector.broadcast %c15_i32 : i32 to vector<8x128xi32>
    %80 = arith.cmpi ne, %78, %79 : vector<8x128xi32>
    %81 = arith.extui %80 : vector<8x128xi1> to vector<8x128xi32>
    %82 = arith.sitofp %81 : vector<8x128xi32> to vector<8x128xf32>
    %cst_22 = arith.constant 1.3020834E-4 : f32
    %83 = vector.broadcast %cst_22 : f32 to vector<8x128xf32>
    %84 = arith.mulf %82, %83 : vector<8x128xf32>
    %85 = arith.subf %46, %1 : vector<4x8x128xf32>
    %86 = math.absf %85 : vector<4x8x128xf32>
    %87 = vector.shape_cast %56 : vector<8x128xf32> to vector<1x8x128xf32>
    %88 = vector.broadcast %87 : vector<1x8x128xf32> to vector<4x8x128xf32>
    %89 = arith.mulf %86, %88 : vector<4x8x128xf32>
    %90 = arith.subf %47, %1 : vector<4x8x128xf32>
    %91 = math.absf %90 : vector<4x8x128xf32>
    %92 = vector.shape_cast %62 : vector<8x128xf32> to vector<1x8x128xf32>
    %93 = vector.broadcast %92 : vector<1x8x128xf32> to vector<4x8x128xf32>
    %94 = arith.mulf %91, %93 : vector<4x8x128xf32>
    %95 = arith.addf %89, %94 : vector<4x8x128xf32>
    %96 = arith.subf %48, %1 : vector<4x8x128xf32>
    %97 = math.absf %96 : vector<4x8x128xf32>
    %98 = vector.shape_cast %84 : vector<8x128xf32> to vector<1x8x128xf32>
    %99 = vector.broadcast %98 : vector<1x8x128xf32> to vector<4x8x128xf32>
    %100 = arith.mulf %97, %99 : vector<4x8x128xf32>
    %101 = arith.addf %95, %100 : vector<4x8x128xf32>
    %102 = vector.shape_cast %101 : vector<4x8x128xf32> to vector<1x4x8x128xf32>
    %cst_23 = arith.constant dense<0.000000e+00> : vector<1xf32>
    %103 = vector.multi_reduction <add>, %102, %cst_23 [1, 2, 3] : vector<1x4x8x128xf32> to vector<1xf32>
    %104 = vector.shape_cast %103 : vector<1xf32> to vector<1x1x1x1xf32>
    %105 = vector.extract %104[0, 0, 0, 0] : f32 from vector<1x1x1x1xf32>
    %cst_24 = arith.constant 4.8828125E-4 : f32
    %106 = arith.mulf %cst_24, %45 : f32
    %cst_25 = arith.constant 1.000000e-01 : f32
    %107 = arith.mulf %cst_25, %105 : f32
    %108 = arith.addf %106, %107 : f32
    %109 = vector.broadcast %108 : f32 to vector<1x1x1xf32>
    %c0_26 = arith.constant 0 : index
    %c0_27 = arith.constant 0 : index
    %c0_28 = arith.constant 0 : index
    %110 = vector.load %arg3[%c0_26, %c0_27, %c0_28] : memref<1x1x1xf32, #tpu.memory_space<vmem>>, vector<1x1x1xf32>
    tpu.vector_store %arg3[%c0_26, %c0_27, %c0_28], %109 {strides = array<i32>} : memref<1x1x1xf32, #tpu.memory_space<vmem>>, vector<1x1x1xf32>,
    return
  }
  func.func @transform_0(%arg0: i32) -> (i32, i32, i32, i32) {
    %c0_i32 = arith.constant 0 : i32
    %c0_i32_0 = arith.constant 0 : i32
    %c0_i32_1 = arith.constant 0 : i32
    %c0_i32_2 = arith.constant 0 : i32
    return %arg0, %c0_i32, %c0_i32_0, %c0_i32_1 : i32, i32, i32, i32
  }
  func.func @transform_1(%arg0: i32) -> (i32, i32, i32) {
    %c0_i32 = arith.constant 0 : i32
    %c0_i32_0 = arith.constant 0 : i32
    %c0_i32_1 = arith.constant 0 : i32
    return %arg0, %c0_i32, %c0_i32_0 : i32, i32, i32
  }
  func.func @transform_2(%arg0: i32) -> (i32, i32, i32) {
    %c0_i32 = arith.constant 0 : i32
    %c0_i32_0 = arith.constant 0 : i32
    %c0_i32_1 = arith.constant 0 : i32
    return %arg0, %c0_i32, %c0_i32_0 : i32, i32, i32
  }
}

</mosaic_0001>

<llo_original>
// kernel: tpu_custom_call.1
$region0: #{tpu_custom_call.1}
  #allocation0 [shape = 'u32[]', space=smem, size = 0x4, offset = 0x4, fixed_abs, tag = 'smem constant byte address 0x4 - core index']
  #allocation1 [shape = 'u32[144,128]{1,0:T(1,128)}', space=vmem, size = 0x12000, scoped, tag = 'internal scratch']
  %s0 = inlined_call_operand.hbm [shape: f32[2,4,8,128], index: 0, kind: input, shape index: {}]
  %s1 = inlined_call_operand.hbm [shape: s32[2,8,128], index: 1, kind: input, shape index: {}]
  %s2 = inlined_call_operand.vmem [shape: f32[2,1,1], index: 2, kind: output, shape index: {}]
  %s3 = sld [smem:[#allocation0]]
  $region49: #{tpu_custom_call.1} parent=0
    _
  %s5 = ssub.s32 1, %s3
  %s6 = scalar_select 0, %s5, %s3
  $region1: #{tpu_custom_call.1} parent=0
    #allocation2 [shape = 'u8[32768]{0}', space=vmem, size = 0x8000, scoped, tag = 'input window, operand 0']
    #allocation3 [shape = 's32[2]{0}', space=sflag, size = 0x8, scoped, tag = 'scoped memory for tpu_custom_call.1']
    #allocation4 [shape = 'u8[8192]{0}', space=vmem, size = 0x2000, scoped, tag = 'input window, operand 1']
    #allocation5 [shape = 's32[2]{0}', space=sflag, size = 0x8, scoped, tag = 'scoped memory for tpu_custom_call.1']
    %7 = vsyncpa [#allocation3], 0
    %s8 = scalar_lea.sflag [#allocation3], 1
    %9 = vsyncpa %s8, 0
    %10 = vsyncpa [#allocation5], 0
    %s11 = scalar_lea.sflag [#allocation5], 1
    %12 = vsyncpa %s11, 0
    loop: start=0, step=1, limit=4
    $region2: #{tpu_custom_call.1} parent=1 // loop_pre_header
      _
    $region3: #{tpu_custom_call.1} parent=1 // loop_header
      %s14 = sphi 0, %s18
      %p15 = scmp.ge.s32.totalorder %s14, 4
      %s24 = sphi 0, %s26
      %s27 = sphi 0, %s24
      %s28 = sphi 0, %s27
      %s44 = sphi 0, %s28
      %s50 = sphi 0, %s52
      %s53 = sphi 0, %s50
      %s54 = sphi 0, %s53
      %s70 = sphi 0, %s54
      %s76 = sphi 0, %s78
      %s79 = sphi 0, %s76
      %s80 = sphi 0, %s79
      %s96 = sphi 0, %s80
    $region4: #{tpu_custom_call.1} parent=1 // loop_header_branch
      %17 = sbr.rel (%p15) target = $region8
    $region5: #{tpu_custom_call.1} parent=1 // loop_body
      %s19 = ssub.s32 %s14, 1
      %s20 = ssub.s32 %s14, 2
      %s21 = sadd.s32 %s14, 1
      %s22 = ssub.s32 %s14, %s21
      %p23 = scmp.eq.s32.totalorder %s22, 0
      %s25 = sadd.s32 %s24, 1
      %s26 = scalar_select %p23, %s24, %s25
      %p29 = pneg %p23
      %p30 = scmp.eq.s32.totalorder %s14, 1
      %p31 = por %p29, %p30
      %p32 = scmp.ne.s32.totalorder %s24, %s27
      %p33 = scmp.eq.s32.totalorder %s14, 0
      %p34 = por %p32, %p33
      %p35 = scmp.ne.s32.totalorder %s24, %s27
      %p36 = scmp.eq.s32.totalorder %s19, 1
      %p37 = por %p35, %p36
      %p38 = scmp.ne.s32.totalorder %s27, %s28
      %p39 = scmp.eq.s32.totalorder %s19, 0
      %p40 = por %p38, %p39
      %p41 = scmp.ne.s32.totalorder %s27, %s28
      %p42 = scmp.eq.s32.totalorder %s20, 1
      %p43 = por %p41, %p42
      %p45 = scmp.ne.s32.totalorder %s28, %s44
      %p46 = scmp.eq.s32.totalorder %s20, 0
      %p47 = por %p45, %p46
      %s48 = ssub.s32 %s14, %s21
      %p49 = scmp.eq.s32.totalorder %s48, 0
      %s51 = sadd.s32 %s50, 1
      %s52 = scalar_select %p49, %s50, %s51
      %p55 = pneg %p49
      %p56 = scmp.eq.s32.totalorder %s14, 1
      %p57 = por %p55, %p56
      %p58 = scmp.ne.s32.totalorder %s50, %s53
      %p59 = scmp.eq.s32.totalorder %s14, 0
      %p60 = por %p58, %p59
      %p61 = scmp.ne.s32.totalorder %s50, %s53
      %p62 = scmp.eq.s32.totalorder %s19, 1
      %p63 = por %p61, %p62
      %p64 = scmp.ne.s32.totalorder %s53, %s54
      %p65 = scmp.eq.s32.totalorder %s19, 0
      %p66 = por %p64, %p65
      %p67 = scmp.ne.s32.totalorder %s53, %s54
      %p68 = scmp.eq.s32.totalorder %s20, 1
      %p69 = por %p67, %p68
      %p71 = scmp.ne.s32.totalorder %s54, %s70
      %p72 = scmp.eq.s32.totalorder %s20, 0
      %p73 = por %p71, %p72
      %s74 = ssub.s32 %s14, %s21
      %p75 = scmp.eq.s32.totalorder %s74, 0
      %s77 = sadd.s32 %s76, 1
      %s78 = scalar_select %p75, %s76, %s77
      %p81 = pneg %p75
      %p82 = scmp.eq.s32.totalorder %s14, 1
      %p83 = por %p81, %p82
      %p84 = scmp.ne.s32.totalorder %s76, %s79
      %p85 = scmp.eq.s32.totalorder %s14, 0
      %p86 = por %p84, %p85
      %p87 = scmp.ne.s32.totalorder %s76, %s79
      %p88 = scmp.eq.s32.totalorder %s19, 1
      %p89 = por %p87, %p88
      %p90 = scmp.ne.s32.totalorder %s79, %s80
      %p91 = scmp.eq.s32.totalorder %s19, 0
      %p92 = por %p90, %p91
      %p93 = scmp.ne.s32.totalorder %s79, %s80
      %p94 = scmp.eq.s32.totalorder %s20, 1
      %p95 = por %p93, %p94
      %p97 = scmp.ne.s32.totalorder %s80, %s96
      %p98 = scmp.eq.s32.totalorder %s20, 0
      %p99 = por %p97, %p98
      %p100 = scmp.le.s32.totalorder 1, %s14
      %p101 = scmp.lt.s32.totalorder %s14, 3
      %p102 = pnand %p100, %p101
      %p103 = pneg %p102
      // Predicated region
      $region9: #{tpu_custom_call.1} parent=5 // pred_check
        _
      $region10: #{tpu_custom_call.1} parent=5 // pred_check_branch
        %105 = sbr.rel (%p102) target = $region12
      $region11: #{tpu_custom_call.1} parent=5 // pred_region
        %s106 = ssub.s32 %s14, 1
      $region12: #{tpu_custom_call.1} parent=5 // pred_fallthru
        _
      %p107 = scmp.lt.s32.totalorder %s14, 2
      // Predicated region
      $region13: #{tpu_custom_call.1} parent=5 // pred_check
        %p108 = pneg %p107
      $region14: #{tpu_custom_call.1} parent=5 // pred_check_branch
        %110 = sbr.rel (%p108) target = $region16
      $region15: #{tpu_custom_call.1} parent=5 // pred_region
        // Predicated region
        $region17: #{tpu_custom_call.1} parent=15 // pred_check
          %p111 = pneg %p34
        $region18: #{tpu_custom_call.1} parent=15 // pred_check_branch
          %113 = sbr.rel (%p111) target = $region20
        $region19: #{tpu_custom_call.1} parent=15 // pred_region
          %s114 = sand.u32 %s24, 1
          %s115 = scalar_lea.sflag [#allocation3], %s114
          %s116 = sand.u32 %s24, 1
          %s117 = smul.addr %s116, 32
          %s118 = scalar_lea.vmem [#allocation2], %s117
          %s120 = ssub.s32 512, 512
          %121 = vsyncadd %s115, %s120
          %s122 = smul.addr %s14, 4
          %s123 = smul.addr %s122, 128
          %s124 = scalar_lea.hbm %s0, %s123
          %s125 = sshll.u32 %s118, 4
          %s126 = int_to_ptr.vmem [resolvable:$true] %s125
          %131 = dma.hbm_to_vmem [thread:$0]  %s124, 512, %s126, %s115, 128, 128, 8
        $region20: #{tpu_custom_call.1} parent=15 // pred_fallthru
          _
        // Predicated region
        $region21: #{tpu_custom_call.1} parent=15 // pred_check
          %p132 = pneg %p60
        $region22: #{tpu_custom_call.1} parent=15 // pred_check_branch
          %134 = sbr.rel (%p132) target = $region24
        $region23: #{tpu_custom_call.1} parent=15 // pred_region
          %s135 = sand.u32 %s50, 1
          %s136 = scalar_lea.sflag [#allocation5], %s135
          %s137 = sand.u32 %s50, 1
          %s138 = smul.addr %s137, 8
          %s139 = scalar_lea.vmem [#allocation4], %s138
          %s141 = ssub.s32 128, 128
          %142 = vsyncadd %s136, %s141
          %s143 = smul.addr %s14, 128
          %s144 = scalar_lea.hbm %s1, %s143
          %s146 = sshll.u32 %s139, 4
          %s147 = int_to_ptr.vmem [resolvable:$true] %s146
          %149 = dma.hbm_to_vmem [thread:$0]  %s144, 128, %s147, %s136
        $region24: #{tpu_custom_call.1} parent=15 // pred_fallthru
          _
      $region16: #{tpu_custom_call.1} parent=5 // pred_fallthru
        _
      %p150 = scmp.le.s32.totalorder 1, %s14
      %p151 = scmp.lt.s32.totalorder %s14, 3
      %p152 = pnand %p150, %p151
      %p153 = pneg %p152
      // Predicated region
      $region25: #{tpu_custom_call.1} parent=5 // pred_check
        _
      $region26: #{tpu_custom_call.1} parent=5 // pred_check_branch
        %155 = sbr.rel (%p152) target = $region28
      $region27: #{tpu_custom_call.1} parent=5 // pred_region
        %s156 = ssub.s32 %s14, 1
        %s157 = sand.u32 %s27, 1
        %s158 = scalar_lea.sflag [#allocation3], %s157
        %s159 = sand.u32 %s27, 1
        %s160 = smul.addr %s159, 32
        %s161 = scalar_lea.vmem [#allocation2], %s160
        // Predicated region
        $region29: #{tpu_custom_call.1} parent=27 // pred_check
          %p162 = pneg %p40
        $region30: #{tpu_custom_call.1} parent=27 // pred_check_branch
          %164 = sbr.rel (%p162) target = $region32
        $region31: #{tpu_custom_call.1} parent=27 // pred_region
          %165 = dma.done %s158, 512
        $region32: #{tpu_custom_call.1} parent=27 // pred_fallthru
          _
        %s166 = sand.u32 %s53, 1
        %s167 = scalar_lea.sflag [#allocation5], %s166
        %s168 = sand.u32 %s53, 1
        %s169 = smul.addr %s168, 8
        %s170 = scalar_lea.vmem [#allocation4], %s169
        // Predicated region
        $region33: #{tpu_custom_call.1} parent=27 // pred_check
          %p171 = pneg %p66
        $region34: #{tpu_custom_call.1} parent=27 // pred_check_branch
          %173 = sbr.rel (%p171) target = $region36
        $region35: #{tpu_custom_call.1} parent=27 // pred_region
          %174 = dma.done %s167, 128
        $region36: #{tpu_custom_call.1} parent=27 // pred_fallthru
          _
        %s175 = sand.u32 %s27, 1
        %s176 = scalar_lea.sflag [#allocation3], %s175
        %s177 = sand.u32 %s27, 1
        %s178 = smul.addr %s177, 32
        %s179 = scalar_lea.vmem [#allocation2], %s178
        %p180 = pneg %p40
        %p181 = pneg %p37
        %s182 = sand.u32 %s53, 1
        %s183 = scalar_lea.sflag [#allocation5], %s182
        %s184 = sand.u32 %s53, 1
        %s185 = smul.addr %s184, 8
        %s186 = scalar_lea.vmem [#allocation4], %s185
        %p187 = pneg %p66
        %p188 = pneg %p63
        %p189 = pneg %p92
        %p190 = pneg %p89
        %p191 = scmp.lt.s32.totalorder %s19, 1
        %s192 = scalar_select %p191, %s19, 1
        %s193 = scalar_lea.vmem %s2, %s192
        %p194 = scmp.lt.s32.totalorder %s19, 1
        %s195 = scalar_select %p194, %s19, 1
        %s196 = scalar_lea.vmem %s2, %s195
        %v197 = vld [vmem:[%s161] sm:$0xff]
        %v198 = vld [vmem:[%s161 + $0x8] sm:$0xff]
        %v199 = vld [vmem:[%s161 + $0x10] sm:$0xff]
        %v200 = vld [vmem:[%s161 + $0x18] sm:$0xff]
        %v201 = vld [vmem:[%s170] sm:$0xff]
        %v202 = vmax.f32 %v197, %v198
        %v203 = vmax.f32 %v199, %v200
        %v204 = vmax.f32 %v202, %v203
        %v205 = vsub.f32 %v197, %v204
        %v206 = vsub.f32 %v198, %v204
        %v207 = vsub.f32 %v199, %v204
        %v208 = vsub.f32 %v200, %v204
        %v209 = vmul.f32 %v205, 1.442695
        %v210 = vpow.pop %v209
        %v211 = vmul.f32 %v206, 1.442695
        %v212 = vpow.pop %v211
        %v213 = vmul.f32 %v207, 1.442695
        %v214 = vpow.pop %v213
        %v215 = vmul.f32 %v208, 1.442695
        %v216 = vpow.pop %v215
        %v217 = vadd.f32 %v210, %v212
        %v218 = vadd.f32 %v217, %v214
        %v219 = vadd.f32 %v218, %v216
        %v220 = vlog2.pop %v219
        %v221 = vmul.f32 %v220, 0.6931472
        %v222 = vadd.f32 %v221, %v204
        %vm223 = vcmp.eq.s32.totalorder %v201, 0
        %v224 = vsel %vm223, %v197, 0.0
        %v225 = vadd.f32 %v224, 0.0
        %vm226 = vcmp.eq.s32.totalorder %v201, 1
        %v227 = vsel %vm226, %v198, 0.0
        %v228 = vadd.f32 %v225, %v227
        %vm229 = vcmp.eq.s32.totalorder %v201, 2
        %v230 = vsel %vm229, %v199, 0.0
        %v231 = vadd.f32 %v228, %v230
        %vm232 = vcmp.eq.s32.totalorder %v201, 3
        %v233 = vsel %vm232, %v200, 0.0
        %v234 = vadd.f32 %v231, %v233
        %v235 = vsub.f32 %v222, %v234
        %236 = vadd.xlane.f32.xlu0 %v235
        %v237 = vpop.xlane.xlu0 %236
        %v238 = vrot.slane %v237, 4
        %v239 = vadd.f32 %v237, %v238
        %v240 = vrot.slane %v239, 2
        %v241 = vadd.f32 %v239, %v240
        %v242 = vrot.slane %v241, 1
        %v243 = vadd.f32 %v241, %v242
        %s244 = vtos %v243
        %v245 = vrot.slane %v197, 1
        %v246 = vrot.slane %v198, 1
        %v247 = vrot.slane %v199, 1
        %v248 = vrot.slane %v200, 1
        %249 = vrot.lane.b32.xlu0 %v197, 112
        %v250 = vpop.permute.xlu0 %249
        %251 = vrot.lane.b32.xlu0 %v198, 112
        %v252 = vpop.permute.xlu0 %251
        %253 = vrot.lane.b32.xlu0 %v199, 112
        %v254 = vpop.permute.xlu0 %253
        %255 = vrot.lane.b32.xlu0 %v200, 112
        %v256 = vpop.permute.xlu0 %255
        %257 = vrot.lane.b32.xlu0 %v197, 127
        %v258 = vpop.permute.xlu0 %257
        %259 = vrot.lane.b32.xlu0 %v198, 127
        %v260 = vpop.permute.xlu0 %259
        %261 = vrot.lane.b32.xlu0 %v199, 127
        %v262 = vpop.permute.xlu0 %261
        %263 = vrot.lane.b32.xlu0 %v200, 127
        %v264 = vpop.permute.xlu0 %263
        %v265 = vlaneseq
        %v266 = vshrl.u32 %v265, 7
        %v267 = vlaneseq
        %v268 = vand.u32 %v267, 127
        %vm269 = vcmp.lt.s32.totalorder %v266, 7
        %v270 = vsel %vm269, 1, 0
        %v271 = vcvt.s32.f32 %v270
        %v272 = vmul.f32 %v271, 0.00013950893
        %vm273 = vcmp.lt.s32.totalorder %v268, 112
        %v274 = vsel %vm273, 1, 0
        %v275 = vcvt.s32.f32 %v274
        %v276 = vmul.f32 %v275, 0.00013950893
        %vm277 = vcmp.lt.s32.totalorder %v268, 0
        %v278 = vsub.s32 0, %v268
        %v279 = vsel %vm277, %v278, %v268
        %v280 = vshrl.u32 %v279, 4
        %v281 = vand.u32 %v279, 15
        %v282 = vsub.s32 0, %v281
        %v283 = vsel %vm277, %v282, %v281
        %vm284 = vcmp.ne.s32.totalorder %v283, 0
        %vm285 = vcmp.lt.s32.totalorder %v283, 0
        %vm286 = vmand %vm285, %vm284
        %v287 = vadd.s32 %v283, 16
        %v288 = vsel %vm286, %v287, %v283
        %vm289 = vcmp.ne.s32.totalorder %v288, 15
        %v290 = vsel %vm289, 1, 0
        %v291 = vcvt.s32.f32 %v290
        %v292 = vmul.f32 %v291, 0.00013020834
        %v293 = vsub.f32 %v245, %v197
        %v294 = vsub.f32 %v246, %v198
        %v295 = vsub.f32 %v247, %v199
        %v296 = vsub.f32 %v248, %v200
        %v297 = vand.u32 2147483647, %v293
        %v298 = vand.u32 2147483647, %v294
        %v299 = vand.u32 2147483647, %v295
        %v300 = vand.u32 2147483647, %v296
        %v301 = vmul.f32 %v297, %v272
        %v302 = vmul.f32 %v298, %v272
        %v303 = vmul.f32 %v299, %v272
        %v304 = vmul.f32 %v300, %v272
        %v305 = vsub.f32 %v250, %v197
        %v306 = vsub.f32 %v252, %v198
        %v307 = vsub.f32 %v254, %v199
        %v308 = vsub.f32 %v256, %v200
        %v309 = vand.u32 2147483647, %v305
        %v310 = vand.u32 2147483647, %v306
        %v311 = vand.u32 2147483647, %v307
        %v312 = vand.u32 2147483647, %v308
        %v313 = vmul.f32 %v309, %v276
        %v314 = vmul.f32 %v310, %v276
        %v315 = vmul.f32 %v311, %v276
        %v316 = vmul.f32 %v312, %v276
        %v317 = vadd.f32 %v301, %v313
        %v318 = vadd.f32 %v302, %v314
        %v319 = vadd.f32 %v303, %v315
        %v320 = vadd.f32 %v304, %v316
        %v321 = vsub.f32 %v258, %v197
        %v322 = vsub.f32 %v260, %v198
        %v323 = vsub.f32 %v262, %v199
        %v324 = vsub.f32 %v264, %v200
        %v325 = vand.u32 2147483647, %v321
        %v326 = vand.u32 2147483647, %v322
        %v327 = vand.u32 2147483647, %v323
        %v328 = vand.u32 2147483647, %v324
        %v329 = vmul.f32 %v325, %v292
        %v330 = vmul.f32 %v326, %v292
        %v331 = vmul.f32 %v327, %v292
        %v332 = vmul.f32 %v328, %v292
        %v333 = vadd.f32 %v317, %v329
        %v334 = vadd.f32 %v318, %v330
        %v335 = vadd.f32 %v319, %v331
        %v336 = vadd.f32 %v320, %v332
        %v337 = vadd.f32 %v333, %v334
        %v338 = vadd.f32 %v337, %v335
        %v339 = vadd.f32 %v338, %v336
        %340 = vadd.xlane.f32.xlu0 %v339
        %v341 = vpop.xlane.xlu0 %340
        %v342 = vrot.slane %v341, 4
        %v343 = vadd.f32 %v341, %v342
        %v344 = vrot.slane %v343, 2
        %v345 = vadd.f32 %v343, %v344
        %v346 = vrot.slane %v345, 1
        %v347 = vadd.f32 %v345, %v346
        %s348 = vtos %v347
        %s349 = smul.f32 %s244, 0.00048828125
        %s350 = smul.f32 %s348, 0.1
        %s351 = sadd.f32 %s349, %s350
        %v352 = vstv %s351
        %vm353 = vcmask 0
        %354 = vst.msk [vmem:[%s196] sm:$0x1] %vm353, %v352
        %p355 = scmp.lt.s32.totalorder %s19, 1
        %s356 = scalar_select %p355, %s19, 1
        %s357 = scalar_lea.vmem %s2, %s356
        // Predicated region
        $region37: #{tpu_custom_call.1} parent=27 // pred_check
          %p358 = pneg %p89
        $region38: #{tpu_custom_call.1} parent=27 // pred_check_branch
          %360 = sbr.rel (%p358) target = $region40
        $region39: #{tpu_custom_call.1} parent=27 // pred_region
          _
        $region40: #{tpu_custom_call.1} parent=27 // pred_fallthru
          _
      $region28: #{tpu_custom_call.1} parent=5 // pred_fallthru
        _
      %p361 = scmp.le.s32.totalorder 2, %s14
      // Predicated region
      $region41: #{tpu_custom_call.1} parent=5 // pred_check
        %p362 = pneg %p361
      $region42: #{tpu_custom_call.1} parent=5 // pred_check_branch
        %364 = sbr.rel (%p362) target = $region44
      $region43: #{tpu_custom_call.1} parent=5 // pred_region
        %s365 = ssub.s32 %s14, 2
        // Predicated region
        $region45: #{tpu_custom_call.1} parent=43 // pred_check
          %p366 = pneg %p95
        $region46: #{tpu_custom_call.1} parent=43 // pred_check_branch
          %368 = sbr.rel (%p366) target = $region48
        $region47: #{tpu_custom_call.1} parent=43 // pred_region
          %p369 = scmp.lt.s32.totalorder %s20, 1
          %s370 = scalar_select %p369, %s20, 1
          %s371 = scalar_lea.vmem %s2, %s370
        $region48: #{tpu_custom_call.1} parent=43 // pred_fallthru
          _
      $region44: #{tpu_custom_call.1} parent=5 // pred_fallthru
        _
    $region6: #{tpu_custom_call.1} parent=1 // loop_footer
      %s18 = sadd.s32 1, %s14
    $region7: #{tpu_custom_call.1} parent=1 // loop_footer_branch
      %13 = sbr.rel target = $region3
    $region8: #{tpu_custom_call.1} parent=1 // loop_exit
      _
    %372 = vsyncpa [#allocation3], 1
    %s373 = scalar_lea.sflag [#allocation3], 1
    %374 = vsyncpa %s373, 1
    %375 = vsyncpa [#allocation5], 1
    %s376 = scalar_lea.sflag [#allocation5], 1
    %377 = vsyncpa %s376, 1

</llo_original>
